<compile_context>
chip_gen: v6e
topology: v6e:2x2x1
jax: 0.10.0
libtpu: 0.0.40
codegen_flags: <defaults>
</compile_context>

<pallas_src>
import functools

import jax
import jax.numpy as jnp
from jax.experimental import pallas as pl
from jax.experimental.pallas import tpu as pltpu


def _make_pad_kernel(pad_t, pad_b, pad_l, pad_r, crop_t, crop_b, crop_l, crop_r, H, W):
    """Kernel specialized for static pad/crop amounts. Blocks are (TB, H, W) -> (TB, Ho, Wo)."""
    Hc = H - crop_t - crop_b          # interior (cropped) height
    Wc = W - crop_l - crop_r          # interior (cropped) width
    Ho = pad_t + Hc + pad_b
    Wo = pad_l + Wc + pad_r

    def kernel(x_ref, o_ref):
        # Load only the (cropped) interior window of this chunk of planes.
        x = x_ref[:, crop_t:H - crop_b, crop_l:W - crop_r]      # (TB, Hc, Wc)
        tb = x.shape[0]

        # Interior.
        o_ref[:, pad_t:pad_t + Hc, pad_l:pad_l + Wc] = x

        # Left / right column strips (replicate first / last interior column).
        if pad_l > 0:
            o_ref[:, pad_t:pad_t + Hc, 0:pad_l] = jnp.broadcast_to(
                x[:, :, :1], (tb, Hc, pad_l))
        if pad_r > 0:
            o_ref[:, pad_t:pad_t + Hc, pad_l + Wc:Wo] = jnp.broadcast_to(
                x[:, :, Wc - 1:Wc], (tb, Hc, pad_r))

        # Top row strip (+ corners), replicating the first interior row.
        if pad_t > 0:
            o_ref[:, 0:pad_t, pad_l:pad_l + Wc] = jnp.broadcast_to(
                x[:, :1, :], (tb, pad_t, Wc))
            if pad_l > 0:
                o_ref[:, 0:pad_t, 0:pad_l] = jnp.broadcast_to(
                    x[:, :1, :1], (tb, pad_t, pad_l))
            if pad_r > 0:
                o_ref[:, 0:pad_t, pad_l + Wc:Wo] = jnp.broadcast_to(
                    x[:, :1, Wc - 1:Wc], (tb, pad_t, pad_r))

        # Bottom row strip (+ corners), replicating the last interior row.
        if pad_b > 0:
            o_ref[:, pad_t + Hc:Ho, pad_l:pad_l + Wc] = jnp.broadcast_to(
                x[:, Hc - 1:Hc, :], (tb, pad_b, Wc))
            if pad_l > 0:
                o_ref[:, pad_t + Hc:Ho, 0:pad_l] = jnp.broadcast_to(
                    x[:, Hc - 1:Hc, :1], (tb, pad_b, pad_l))
            if pad_r > 0:
                o_ref[:, pad_t + Hc:Ho, pad_l + Wc:Wo] = jnp.broadcast_to(
                    x[:, Hc - 1:Hc, Wc - 1:Wc], (tb, pad_b, pad_r))

    return kernel


def _choose_tb(num_planes, plane_in_bytes, plane_out_bytes, target_bytes=4 << 20):
    """Largest divisor of num_planes whose combined in+out block stays under target_bytes."""
    per_plane = max(1, plane_in_bytes + plane_out_bytes)
    max_tb = max(1, min(num_planes, target_bytes // per_plane))
    for tb in range(int(max_tb), 0, -1):
        if num_planes % tb == 0:
            return tb
    return 1


@functools.partial(jax.jit, static_argnums=(1,))
def replication_pad2d(x, padding):
    """JAX/Pallas equivalent of nn.ReplicationPad2d / replication_pad2d_naive on NCHW input.

    padding = (left, right, top, bottom); negative values crop (as in the naive torch impl).
    (The `detach` flag of the torch module only affects autograd, not the forward values.)
    """
    left, right, top, bottom = padding
    N, C, H, W = x.shape

    pad_l, pad_r = max(0, left), max(0, right)
    pad_t, pad_b = max(0, top), max(0, bottom)
    crop_l, crop_r = max(0, -left), max(0, -right)
    crop_t, crop_b = max(0, -top), max(0, -bottom)

    Hc = H - crop_t - crop_b
    Wc = W - crop_l - crop_r
    assert Hc > 0 and Wc > 0, "crop exceeds input extent (PyTorch requires pad < dim)"
    Ho = pad_t + Hc + pad_b
    Wo = pad_l + Wc + pad_r
    assert Ho > 0 and Wo > 0, "resulting spatial dims must be positive"

    itemsize = jnp.dtype(x.dtype).itemsize
    num_planes = N * C
    tb = _choose_tb(num_planes, H * W * itemsize, Ho * Wo * itemsize)

    kernel = _make_pad_kernel(pad_t, pad_b, pad_l, pad_r,
                              crop_t, crop_b, crop_l, crop_r, H, W)

    x_flat = x.reshape(num_planes, H, W)
    out_flat = pl.pallas_call(
        kernel,
        out_shape=jax.ShapeDtypeStruct((num_planes, Ho, Wo), x.dtype),
        grid=(num_planes // tb,),
        in_specs=[pl.BlockSpec((tb, H, W), lambda i: (i, 0, 0))],
        out_specs=pl.BlockSpec((tb, Ho, Wo), lambda i: (i, 0, 0)),
        compiler_params=pltpu.CompilerParams(
            dimension_semantics=("parallel",),
            vmem_limit_bytes=48 * 1024 * 1024,
        ),
        cost_estimate=pl.CostEstimate(
            flops=0,
            transcendentals=0,
            bytes_accessed=num_planes * (H * W + Ho * Wo) * itemsize,
        ),
    )(x_flat)
    return out_flat.reshape(N, C, Ho, Wo)


def _reference_pad(x, padding):
    """Pure-JAX reference mirroring replication_pad2d_naive semantics (clip-based gather)."""
    left, right, top, bottom = padding
    N, C, H, W = x.shape
    Ho = H + top + bottom
    Wo = W + left + right
    rows = jnp.clip(jnp.arange(Ho) - top, 0, H - 1)
    cols = jnp.clip(jnp.arange(Wo) - left, 0, W - 1)
    return x[:, :, rows, :][:, :, :, cols]


if __name__ == "__main__":
    key = jax.random.PRNGKey(0)
    x = jax.random.normal(key, (2, 4, 16, 16), dtype=jnp.float32)

    # positive padding (replicate edges)
    pad_pos = (2, 3, 1, 2)  # (left, right, top, bottom)
    y = replication_pad2d(x, pad_pos)
    y = jax.block_until_ready(y)
    y_ref = _reference_pad(x, pad_pos)
    assert y.shape == (2, 4, 16 + 1 + 2, 16 + 2 + 3)
    assert jnp.array_equal(y, y_ref)

    # mixed positive / negative padding (pad + crop)
    pad_mix = (-2, 1, 2, -3)
    y2 = replication_pad2d(x, pad_mix)
    y2 = jax.block_until_ready(y2)
    y2_ref = _reference_pad(x, pad_mix)
    assert y2.shape == (2, 4, 16 + 2 - 3, 16 - 2 + 1)
    assert jnp.array_equal(y2, y2_ref)

    # zero padding (pure copy path)
    pad_zero = (0, 0, 0, 0)
    y3 = jax.block_until_ready(replication_pad2d(x, pad_zero))
    assert jnp.array_equal(y3, x)

    print("KERNEL_OK")
</pallas_src>

<mosaic_0001>
module attributes {stable_mosaic.version = 11 : i64} {
  func.func @kernel(%arg0: i32, %arg1: memref<8x16x16xf32, #tpu.memory_space<vmem>>, %arg2: memref<8x19x21xf32, #tpu.memory_space<vmem>>) attributes {dimension_semantics = [#tpu.dimension_semantics<parallel>], iteration_bounds = array<i64: 1>, scalar_prefetch = 0 : i64, scratch_operands = 0 : i64, tpu.core_type = #tpu.core_type<tc>, window_params = [{transform_indices = @transform_0, window_bounds = array<i64: 8, 16, 16>}, {transform_indices = @transform_1, window_bounds = array<i64: 8, 19, 21>}]} {
    %c0 = arith.constant 0 : index
    %c0_0 = arith.constant 0 : index
    %c0_1 = arith.constant 0 : index
    %0 = vector.load %arg1[%c0, %c0_0, %c0_1] : memref<8x16x16xf32, #tpu.memory_space<vmem>>, vector<8x16x16xf32>
    %c0_2 = arith.constant 0 : index
    %c1 = arith.constant 1 : index
    %c2 = arith.constant 2 : index
    %1 = vector.load %arg2[%c0_2, %c1, %c2] : memref<8x19x21xf32, #tpu.memory_space<vmem>>, vector<8x16x16xf32>
    tpu.vector_store %arg2[%c0_2, %c1, %c2], %0 {strides = array<i32>} : memref<8x19x21xf32, #tpu.memory_space<vmem>>, vector<8x16x16xf32>,
    %2 = vector.extract_strided_slice %0 {offsets = [0, 0, 0], sizes = [8, 16, 1], strides = [1, 1, 1]} : vector<8x16x16xf32> to vector<8x16x1xf32>
    %3 = vector.shape_cast %2 : vector<8x16x1xf32> to vector<8x16x1xf32>
    %4 = vector.broadcast %3 : vector<8x16x1xf32> to vector<8x16x2xf32>
    %c0_3 = arith.constant 0 : index
    %c1_4 = arith.constant 1 : index
    %c0_5 = arith.constant 0 : index
    %5 = vector.load %arg2[%c0_3, %c1_4, %c0_5] : memref<8x19x21xf32, #tpu.memory_space<vmem>>, vector<8x16x2xf32>
    tpu.vector_store %arg2[%c0_3, %c1_4, %c0_5], %4 {strides = array<i32>} : memref<8x19x21xf32, #tpu.memory_space<vmem>>, vector<8x16x2xf32>,
    %6 = vector.extract_strided_slice %0 {offsets = [0, 0, 15], sizes = [8, 16, 1], strides = [1, 1, 1]} : vector<8x16x16xf32> to vector<8x16x1xf32>
    %7 = vector.shape_cast %6 : vector<8x16x1xf32> to vector<8x16x1xf32>
    %8 = vector.broadcast %7 : vector<8x16x1xf32> to vector<8x16x3xf32>
    %c0_6 = arith.constant 0 : index
    %c1_7 = arith.constant 1 : index
    %c18 = arith.constant 18 : index
    %9 = vector.load %arg2[%c0_6, %c1_7, %c18] : memref<8x19x21xf32, #tpu.memory_space<vmem>>, vector<8x16x3xf32>
    tpu.vector_store %arg2[%c0_6, %c1_7, %c18], %8 {strides = array<i32>} : memref<8x19x21xf32, #tpu.memory_space<vmem>>, vector<8x16x3xf32>,
    %10 = vector.extract_strided_slice %0 {offsets = [0, 0, 0], sizes = [8, 1, 16], strides = [1, 1, 1]} : vector<8x16x16xf32> to vector<8x1x16xf32>
    %c0_8 = arith.constant 0 : index
    %c0_9 = arith.constant 0 : index
    %c2_10 = arith.constant 2 : index
    %11 = vector.load %arg2[%c0_8, %c0_9, %c2_10] : memref<8x19x21xf32, #tpu.memory_space<vmem>>, vector<8x1x16xf32>
    tpu.vector_store %arg2[%c0_8, %c0_9, %c2_10], %10 {strides = array<i32>} : memref<8x19x21xf32, #tpu.memory_space<vmem>>, vector<8x1x16xf32>,
    %12 = vector.extract_strided_slice %0 {offsets = [0, 0, 0], sizes = [8, 1, 1], strides = [1, 1, 1]} : vector<8x16x16xf32> to vector<8x1x1xf32>
    %13 = vector.shape_cast %12 : vector<8x1x1xf32> to vector<8x1x1xf32>
    %14 = vector.broadcast %13 : vector<8x1x1xf32> to vector<8x1x2xf32>
    %c0_11 = arith.constant 0 : index
    %c0_12 = arith.constant 0 : index
    %c0_13 = arith.constant 0 : index
    %15 = vector.load %arg2[%c0_11, %c0_12, %c0_13] : memref<8x19x21xf32, #tpu.memory_space<vmem>>, vector<8x1x2xf32>
    tpu.vector_store %arg2[%c0_11, %c0_12, %c0_13], %14 {strides = array<i32>} : memref<8x19x21xf32, #tpu.memory_space<vmem>>, vector<8x1x2xf32>,
    %16 = vector.extract_strided_slice %0 {offsets = [0, 0, 15], sizes = [8, 1, 1], strides = [1, 1, 1]} : vector<8x16x16xf32> to vector<8x1x1xf32>
    %17 = vector.shape_cast %16 : vector<8x1x1xf32> to vector<8x1x1xf32>
    %18 = vector.broadcast %17 : vector<8x1x1xf32> to vector<8x1x3xf32>
    %c0_14 = arith.constant 0 : index
    %c0_15 = arith.constant 0 : index
    %c18_16 = arith.constant 18 : index
    %19 = vector.load %arg2[%c0_14, %c0_15, %c18_16] : memref<8x19x21xf32, #tpu.memory_space<vmem>>, vector<8x1x3xf32>
    tpu.vector_store %arg2[%c0_14, %c0_15, %c18_16], %18 {strides = array<i32>} : memref<8x19x21xf32, #tpu.memory_space<vmem>>, vector<8x1x3xf32>,
    %20 = vector.extract_strided_slice %0 {offsets = [0, 15, 0], sizes = [8, 1, 16], strides = [1, 1, 1]} : vector<8x16x16xf32> to vector<8x1x16xf32>
    %21 = vector.shape_cast %20 : vector<8x1x16xf32> to vector<8x1x16xf32>
    %22 = vector.broadcast %21 : vector<8x1x16xf32> to vector<8x2x16xf32>
    %c0_17 = arith.constant 0 : index
    %c17 = arith.constant 17 : index
    %c2_18 = arith.constant 2 : index
    %23 = vector.load %arg2[%c0_17, %c17, %c2_18] : memref<8x19x21xf32, #tpu.memory_space<vmem>>, vector<8x2x16xf32>
    tpu.vector_store %arg2[%c0_17, %c17, %c2_18], %22 {strides = array<i32>} : memref<8x19x21xf32, #tpu.memory_space<vmem>>, vector<8x2x16xf32>,
    %24 = vector.extract_strided_slice %0 {offsets = [0, 15, 0], sizes = [8, 1, 1], strides = [1, 1, 1]} : vector<8x16x16xf32> to vector<8x1x1xf32>
    %25 = vector.shape_cast %24 : vector<8x1x1xf32> to vector<8x1x1xf32>
    %26 = vector.broadcast %25 : vector<8x1x1xf32> to vector<8x2x2xf32>
    %c0_19 = arith.constant 0 : index
    %c17_20 = arith.constant 17 : index
    %c0_21 = arith.constant 0 : index
    %27 = vector.load %arg2[%c0_19, %c17_20, %c0_21] : memref<8x19x21xf32, #tpu.memory_space<vmem>>, vector<8x2x2xf32>
    tpu.vector_store %arg2[%c0_19, %c17_20, %c0_21], %26 {strides = array<i32>} : memref<8x19x21xf32, #tpu.memory_space<vmem>>, vector<8x2x2xf32>,
    %28 = vector.extract_strided_slice %0 {offsets = [0, 15, 15], sizes = [8, 1, 1], strides = [1, 1, 1]} : vector<8x16x16xf32> to vector<8x1x1xf32>
    %29 = vector.shape_cast %28 : vector<8x1x1xf32> to vector<8x1x1xf32>
    %30 = vector.broadcast %29 : vector<8x1x1xf32> to vector<8x2x3xf32>
    %c0_22 = arith.constant 0 : index
    %c17_23 = arith.constant 17 : index
    %c18_24 = arith.constant 18 : index
    %31 = vector.load %arg2[%c0_22, %c17_23, %c18_24] : memref<8x19x21xf32, #tpu.memory_space<vmem>>, vector<8x2x3xf32>
    tpu.vector_store %arg2[%c0_22, %c17_23, %c18_24], %30 {strides = array<i32>} : memref<8x19x21xf32, #tpu.memory_space<vmem>>, vector<8x2x3xf32>,
    return
  }
  func.func @transform_0(%arg0: i32) -> (i32, i32, i32) {
    %c0_i32 = arith.constant 0 : i32
    %c0_i32_0 = arith.constant 0 : i32
    %c0_i32_1 = arith.constant 0 : i32
    return %arg0, %c0_i32, %c0_i32_0 : i32, i32, i32
  }
  func.func @transform_1(%arg0: i32) -> (i32, i32, i32) {
    %c0_i32 = arith.constant 0 : i32
    %c0_i32_0 = arith.constant 0 : i32
    %c0_i32_1 = arith.constant 0 : i32
    return %arg0, %c0_i32, %c0_i32_0 : i32, i32, i32
  }
}

</mosaic_0001>

<llo_original>
// kernel: replication_pad2d.1
$region0: #{replication_pad2d.1}
  #allocation0 [shape = 'u32[]', space=smem, size = 0x4, offset = 0x4, fixed_abs, tag = 'smem constant byte address 0x4 - core index']
  #allocation1 [shape = 'u32[144,128]{1,0:T(1,128)}', space=vmem, size = 0x12000, scoped, tag = 'internal scratch']
  %s0 = inlined_call_operand.hbm [shape: f32[8,16,16], index: 0, kind: input, shape index: {}]
  %s1 = inlined_call_operand.vmem [shape: f32[8,19,21], index: 1, kind: output, shape index: {}]
  %s2 = sld [smem:[#allocation0]]
  $region18: #{replication_pad2d.1} parent=0
    _
  %s4 = ssub.s32 1, %s2
  %s5 = scalar_select 0, %s4, %s2
  $region1: #{replication_pad2d.1} parent=0
    #allocation2 [shape = 'u8[65536]{0}', space=vmem, size = 0x10000, scoped, tag = 'input window, operand 0, single buffered']
    #allocation3 [shape = 's32[1]{0}', space=sflag, size = 0x4, scoped, tag = 'scoped memory for replication_pad2d.1']
    %6 = vsyncpa [#allocation3], 0
    // Predicated region
    $region2: #{replication_pad2d.1} parent=1 // pred_check
      _
    $region3: #{replication_pad2d.1} parent=1 // pred_check_branch
      %8 = sbr.rel (0) target = $region5
    $region4: #{replication_pad2d.1} parent=1 // pred_region
      %s10 = ssub.s32 2048, 2048
      %11 = vsyncadd [#allocation3], %s10
      %s12 = sshll.u32 [#allocation2], 4
      %s13 = int_to_ptr.vmem [resolvable:$true] %s12
      %18 = dma.hbm_to_vmem [thread:$0]  %s0, 2048, %s13, [#allocation3], 128, 128, 8
    $region5: #{replication_pad2d.1} parent=1 // pred_fallthru
      _
    // Predicated region
    $region6: #{replication_pad2d.1} parent=1 // pred_check
      _
    $region7: #{replication_pad2d.1} parent=1 // pred_check_branch
      %20 = sbr.rel (0) target = $region9
    $region8: #{replication_pad2d.1} parent=1 // pred_region
      %21 = dma.done [#allocation3], 2048
    $region9: #{replication_pad2d.1} parent=1 // pred_fallthru
      _
    %v22 = vld [vmem:[#allocation2] sm:$0xff]
    %v23 = vld [vmem:[#allocation2 + $0x8] sm:$0xff]
    %v24 = vld [vmem:[#allocation2 + $0x10] sm:$0xff]
    %v25 = vld [vmem:[#allocation2 + $0x18] sm:$0xff]
    %v26 = vld [vmem:[#allocation2 + $0x20] sm:$0xff]
    %v27 = vld [vmem:[#allocation2 + $0x28] sm:$0xff]
    %v28 = vld [vmem:[#allocation2 + $0x30] sm:$0xff]
    %v29 = vld [vmem:[#allocation2 + $0x38] sm:$0xff]
    %v30 = vld [vmem:[#allocation2 + $0x40] sm:$0xff]
    %v31 = vld [vmem:[#allocation2 + $0x48] sm:$0xff]
    %v32 = vld [vmem:[#allocation2 + $0x50] sm:$0xff]
    %v33 = vld [vmem:[#allocation2 + $0x58] sm:$0xff]
    %v34 = vld [vmem:[#allocation2 + $0x60] sm:$0xff]
    %v35 = vld [vmem:[#allocation2 + $0x68] sm:$0xff]
    %v36 = vld [vmem:[#allocation2 + $0x70] sm:$0xff]
    %v37 = vld [vmem:[#allocation2 + $0x78] sm:$0xff]
    %54 = vrot.lane.b32.xlu0 %v22, 2
    %v55 = vpop.permute.xlu0 %54
    %56 = vrot.lane.b32.xlu0 %v23, 2
    %v57 = vpop.permute.xlu0 %56
    %58 = vrot.lane.b32.xlu0 %v24, 2
    %v59 = vpop.permute.xlu0 %58
    %60 = vrot.lane.b32.xlu0 %v25, 2
    %v61 = vpop.permute.xlu0 %60
    %62 = vrot.lane.b32.xlu0 %v26, 2
    %v63 = vpop.permute.xlu0 %62
    %64 = vrot.lane.b32.xlu0 %v27, 2
    %v65 = vpop.permute.xlu0 %64
    %66 = vrot.lane.b32.xlu0 %v28, 2
    %v67 = vpop.permute.xlu0 %66
    %68 = vrot.lane.b32.xlu0 %v29, 2
    %v69 = vpop.permute.xlu0 %68
    %70 = vrot.lane.b32.xlu0 %v30, 2
    %v71 = vpop.permute.xlu0 %70
    %72 = vrot.lane.b32.xlu0 %v31, 2
    %v73 = vpop.permute.xlu0 %72
    %74 = vrot.lane.b32.xlu0 %v32, 2
    %v75 = vpop.permute.xlu0 %74
    %76 = vrot.lane.b32.xlu0 %v33, 2
    %v77 = vpop.permute.xlu0 %76
    %78 = vrot.lane.b32.xlu0 %v34, 2
    %v79 = vpop.permute.xlu0 %78
    %80 = vrot.lane.b32.xlu0 %v35, 2
    %v81 = vpop.permute.xlu0 %80
    %82 = vrot.lane.b32.xlu0 %v36, 2
    %v83 = vpop.permute.xlu0 %82
    %84 = vrot.lane.b32.xlu0 %v37, 2
    %v85 = vpop.permute.xlu0 %84
    %vm102 = vcmask 146448
    %103 = vst.msk [vmem:[%s1 + $0x1] sm:$0xff] %vm102, %v55
    %104 = vst.msk [vmem:[%s1 + $0x9] sm:$0xff] %vm102, %v57
    %105 = vst.msk [vmem:[%s1 + $0x19] sm:$0xff] %vm102, %v59
    %106 = vst.msk [vmem:[%s1 + $0x21] sm:$0xff] %vm102, %v61
    %107 = vst.msk [vmem:[%s1 + $0x31] sm:$0xff] %vm102, %v63
    %108 = vst.msk [vmem:[%s1 + $0x39] sm:$0xff] %vm102, %v65
    %109 = vst.msk [vmem:[%s1 + $0x49] sm:$0xff] %vm102, %v67
    %110 = vst.msk [vmem:[%s1 + $0x51] sm:$0xff] %vm102, %v69
    %111 = vst.msk [vmem:[%s1 + $0x61] sm:$0xff] %vm102, %v71
    %112 = vst.msk [vmem:[%s1 + $0x69] sm:$0xff] %vm102, %v73
    %113 = vst.msk [vmem:[%s1 + $0x79] sm:$0xff] %vm102, %v75
    %114 = vst.msk [vmem:[%s1 + $0x81] sm:$0xff] %vm102, %v77
    %115 = vst.msk [vmem:[%s1 + $0x91] sm:$0xff] %vm102, %v79
    %116 = vst.msk [vmem:[%s1 + $0x99] sm:$0xff] %vm102, %v81
    %117 = vst.msk [vmem:[%s1 + $0xa9] sm:$0xff] %vm102, %v83
    %118 = vst.msk [vmem:[%s1 + $0xb1] sm:$0xff] %vm102, %v85
    %119 = vset.pattern.permute.xlu0 0
    %120 = vperm.xlu0 %119, %v22
    %v121 = vpop.permute.xlu0 %120
    %123 = vset.pattern.permute.xlu0 0
    %124 = vperm.xlu0 %123, %v23
    %v125 = vpop.permute.xlu0 %124
    %127 = vset.pattern.permute.xlu0 0
    %128 = vperm.xlu0 %127, %v24
    %v129 = vpop.permute.xlu0 %128
    %131 = vset.pattern.permute.xlu0 0
    %132 = vperm.xlu0 %131, %v25
    %v133 = vpop.permute.xlu0 %132
    %135 = vset.pattern.permute.xlu0 0
    %136 = vperm.xlu0 %135, %v26
    %v137 = vpop.permute.xlu0 %136
    %139 = vset.pattern.permute.xlu0 0
    %140 = vperm.xlu0 %139, %v27
    %v141 = vpop.permute.xlu0 %140
    %143 = vset.pattern.permute.xlu0 0
    %144 = vperm.xlu0 %143, %v28
    %v145 = vpop.permute.xlu0 %144
    %147 = vset.pattern.permute.xlu0 0
    %148 = vperm.xlu0 %147, %v29
    %v149 = vpop.permute.xlu0 %148
    %151 = vset.pattern.permute.xlu0 0
    %152 = vperm.xlu0 %151, %v30
    %v153 = vpop.permute.xlu0 %152
    %155 = vset.pattern.permute.xlu0 0
    %156 = vperm.xlu0 %155, %v31
    %v157 = vpop.permute.xlu0 %156
    %159 = vset.pattern.permute.xlu0 0
    %160 = vperm.xlu0 %159, %v32
    %v161 = vpop.permute.xlu0 %160
    %163 = vset.pattern.permute.xlu0 0
    %164 = vperm.xlu0 %163, %v33
    %v165 = vpop.permute.xlu0 %164
    %167 = vset.pattern.permute.xlu0 0
    %168 = vperm.xlu0 %167, %v34
    %v169 = vpop.permute.xlu0 %168
    %171 = vset.pattern.permute.xlu0 0
    %172 = vperm.xlu0 %171, %v35
    %v173 = vpop.permute.xlu0 %172
    %175 = vset.pattern.permute.xlu0 0
    %176 = vperm.xlu0 %175, %v36
    %v177 = vpop.permute.xlu0 %176
    %179 = vset.pattern.permute.xlu0 0
    %180 = vperm.xlu0 %179, %v37
    %v181 = vpop.permute.xlu0 %180
    %vm183 = vcmask 15360
    %184 = vst.msk [vmem:[%s1 + $0x1] sm:$0xff] %vm183, %v121
    %185 = vst.msk [vmem:[%s1 + $0x9] sm:$0xff] %vm183, %v125
    %186 = vst.msk [vmem:[%s1 + $0x19] sm:$0xff] %vm183, %v129
    %187 = vst.msk [vmem:[%s1 + $0x21] sm:$0xff] %vm183, %v133
    %188 = vst.msk [vmem:[%s1 + $0x31] sm:$0xff] %vm183, %v137
    %189 = vst.msk [vmem:[%s1 + $0x39] sm:$0xff] %vm183, %v141
    %190 = vst.msk [vmem:[%s1 + $0x49] sm:$0xff] %vm183, %v145
    %191 = vst.msk [vmem:[%s1 + $0x51] sm:$0xff] %vm183, %v149
    %192 = vst.msk [vmem:[%s1 + $0x61] sm:$0xff] %vm183, %v153
    %193 = vst.msk [vmem:[%s1 + $0x69] sm:$0xff] %vm183, %v157
    %194 = vst.msk [vmem:[%s1 + $0x79] sm:$0xff] %vm183, %v161
    %195 = vst.msk [vmem:[%s1 + $0x81] sm:$0xff] %vm183, %v165
    %196 = vst.msk [vmem:[%s1 + $0x91] sm:$0xff] %vm183, %v169
    %197 = vst.msk [vmem:[%s1 + $0x99] sm:$0xff] %vm183, %v173
    %198 = vst.msk [vmem:[%s1 + $0xa9] sm:$0xff] %vm183, %v177
    %199 = vst.msk [vmem:[%s1 + $0xb1] sm:$0xff] %vm183, %v181
    %200 = vset.pattern.permute.xlu0 15
    %201 = vperm.xlu0 %200, %v22
    %v202 = vpop.permute.xlu0 %201
    %204 = vset.pattern.permute.xlu0 15
    %205 = vperm.xlu0 %204, %v23
    %v206 = vpop.permute.xlu0 %205
    %208 = vset.pattern.permute.xlu0 15
    %209 = vperm.xlu0 %208, %v24
    %v210 = vpop.permute.xlu0 %209
    %212 = vset.pattern.permute.xlu0 15
    %213 = vperm.xlu0 %212, %v25
    %v214 = vpop.permute.xlu0 %213
    %216 = vset.pattern.permute.xlu0 15
    %217 = vperm.xlu0 %216, %v26
    %v218 = vpop.permute.xlu0 %217
    %220 = vset.pattern.permute.xlu0 15
    %221 = vperm.xlu0 %220, %v27
    %v222 = vpop.permute.xlu0 %221
    %224 = vset.pattern.permute.xlu0 15
    %225 = vperm.xlu0 %224, %v28
    %v226 = vpop.permute.xlu0 %225
    %228 = vset.pattern.permute.xlu0 15
    %229 = vperm.xlu0 %228, %v29
    %v230 = vpop.permute.xlu0 %229
    %232 = vset.pattern.permute.xlu0 15
    %233 = vperm.xlu0 %232, %v30
    %v234 = vpop.permute.xlu0 %233
    %236 = vset.pattern.permute.xlu0 15
    %237 = vperm.xlu0 %236, %v31
    %v238 = vpop.permute.xlu0 %237
    %240 = vset.pattern.permute.xlu0 15
    %241 = vperm.xlu0 %240, %v32
    %v242 = vpop.permute.xlu0 %241
    %244 = vset.pattern.permute.xlu0 15
    %245 = vperm.xlu0 %244, %v33
    %v246 = vpop.permute.xlu0 %245
    %248 = vset.pattern.permute.xlu0 15
    %249 = vperm.xlu0 %248, %v34
    %v250 = vpop.permute.xlu0 %249
    %252 = vset.pattern.permute.xlu0 15
    %253 = vperm.xlu0 %252, %v35
    %v254 = vpop.permute.xlu0 %253
    %256 = vset.pattern.permute.xlu0 15
    %257 = vperm.xlu0 %256, %v36
    %v258 = vpop.permute.xlu0 %257
    %260 = vset.pattern.permute.xlu0 15
    %261 = vperm.xlu0 %260, %v37
    %v262 = vpop.permute.xlu0 %261
    %vm264 = vcmask 171152
    %265 = vst.msk [vmem:[%s1 + $0x1] sm:$0xff] %vm264, %v202
    %266 = vst.msk [vmem:[%s1 + $0x9] sm:$0xff] %vm264, %v206
    %267 = vst.msk [vmem:[%s1 + $0x19] sm:$0xff] %vm264, %v210
    %268 = vst.msk [vmem:[%s1 + $0x21] sm:$0xff] %vm264, %v214
    %269 = vst.msk [vmem:[%s1 + $0x31] sm:$0xff] %vm264, %v218
    %270 = vst.msk [vmem:[%s1 + $0x39] sm:$0xff] %vm264, %v222
    %271 = vst.msk [vmem:[%s1 + $0x49] sm:$0xff] %vm264, %v226
    %272 = vst.msk [vmem:[%s1 + $0x51] sm:$0xff] %vm264, %v230
    %273 = vst.msk [vmem:[%s1 + $0x61] sm:$0xff] %vm264, %v234
    %274 = vst.msk [vmem:[%s1 + $0x69] sm:$0xff] %vm264, %v238
    %275 = vst.msk [vmem:[%s1 + $0x79] sm:$0xff] %vm264, %v242
    %276 = vst.msk [vmem:[%s1 + $0x81] sm:$0xff] %vm264, %v246
    %277 = vst.msk [vmem:[%s1 + $0x91] sm:$0xff] %vm264, %v250
    %278 = vst.msk [vmem:[%s1 + $0x99] sm:$0xff] %vm264, %v254
    %279 = vst.msk [vmem:[%s1 + $0xa9] sm:$0xff] %vm264, %v258
    %280 = vst.msk [vmem:[%s1 + $0xb1] sm:$0xff] %vm264, %v262
    %vm281 = vcmask 139280
    %282 = vst.msk [vmem:[%s1] sm:$0x1] %vm281, %v55
    %283 = vst.msk [vmem:[%s1 + $0x18] sm:$0x1] %vm281, %v59
    %284 = vst.msk [vmem:[%s1 + $0x30] sm:$0x1] %vm281, %v63
    %285 = vst.msk [vmem:[%s1 + $0x48] sm:$0x1] %vm281, %v67
    %286 = vst.msk [vmem:[%s1 + $0x60] sm:$0x1] %vm281, %v71
    %287 = vst.msk [vmem:[%s1 + $0x78] sm:$0x1] %vm281, %v75
    %288 = vst.msk [vmem:[%s1 + $0x90] sm:$0x1] %vm281, %v79
    %289 = vst.msk [vmem:[%s1 + $0xa8] sm:$0x1] %vm281, %v83
    %vm290 = vcmask 8192
    %291 = vst.msk [vmem:[%s1] sm:$0x1] %vm290, %v121
    %292 = vst.msk [vmem:[%s1 + $0x18] sm:$0x1] %vm290, %v129
    %293 = vst.msk [vmem:[%s1 + $0x30] sm:$0x1] %vm290, %v137
    %294 = vst.msk [vmem:[%s1 + $0x48] sm:$0x1] %vm290, %v145
    %295 = vst.msk [vmem:[%s1 + $0x60] sm:$0x1] %vm290, %v153
    %296 = vst.msk [vmem:[%s1 + $0x78] sm:$0x1] %vm290, %v161
    %297 = vst.msk [vmem:[%s1 + $0x90] sm:$0x1] %vm290, %v169
    %298 = vst.msk [vmem:[%s1 + $0xa8] sm:$0x1] %vm290, %v177
    %vm299 = vcmask 163984
    %300 = vst.msk [vmem:[%s1] sm:$0x1] %vm299, %v202
    %301 = vst.msk [vmem:[%s1 + $0x18] sm:$0x1] %vm299, %v210
    %302 = vst.msk [vmem:[%s1 + $0x30] sm:$0x1] %vm299, %v218
    %303 = vst.msk [vmem:[%s1 + $0x48] sm:$0x1] %vm299, %v226
    %304 = vst.msk [vmem:[%s1 + $0x60] sm:$0x1] %vm299, %v234
    %305 = vst.msk [vmem:[%s1 + $0x78] sm:$0x1] %vm299, %v242
    %306 = vst.msk [vmem:[%s1 + $0x90] sm:$0x1] %vm299, %v250
    %307 = vst.msk [vmem:[%s1 + $0xa8] sm:$0x1] %vm299, %v258
    %v308 = vlaneseq
    %v309 = vshrl.u32 %v308, 7
    %v310 = vsub.s32 7, %v309
    %v311 = vrot.slane %v23, %v310
    %v312 = vlaneseq
    %v313 = vshrl.u32 %v312, 7
    %v314 = vsub.s32 7, %v313
    %v315 = vrot.slane %v25, %v314
    %v316 = vlaneseq
    %v317 = vshrl.u32 %v316, 7
    %v318 = vsub.s32 7, %v317
    %v319 = vrot.slane %v27, %v318
    %v320 = vlaneseq
    %v321 = vshrl.u32 %v320, 7
    %v322 = vsub.s32 7, %v321
    %v323 = vrot.slane %v29, %v322
    %v324 = vlaneseq
    %v325 = vshrl.u32 %v324, 7
    %v326 = vsub.s32 7, %v325
    %v327 = vrot.slane %v31, %v326
    %v328 = vlaneseq
    %v329 = vshrl.u32 %v328, 7
    %v330 = vsub.s32 7, %v329
    %v331 = vrot.slane %v33, %v330
    %v332 = vlaneseq
    %v333 = vshrl.u32 %v332, 7
    %v334 = vsub.s32 7, %v333
    %v335 = vrot.slane %v35, %v334
    %v336 = vlaneseq
    %v337 = vshrl.u32 %v336, 7
    %v338 = vsub.s32 7, %v337
    %v339 = vrot.slane %v37, %v338
    %348 = vrot.lane.b32.xlu0 %v311, 2
    %v349 = vpop.permute.xlu0 %348
    %350 = vrot.lane.b32.xlu0 %v315, 2
    %v351 = vpop.permute.xlu0 %350
    %352 = vrot.lane.b32.xlu0 %v319, 2
    %v353 = vpop.permute.xlu0 %352
    %354 = vrot.lane.b32.xlu0 %v323, 2
    %v355 = vpop.permute.xlu0 %354
    %356 = vrot.lane.b32.xlu0 %v327, 2
    %v357 = vpop.permute.xlu0 %356
    %358 = vrot.lane.b32.xlu0 %v331, 2
    %v359 = vpop.permute.xlu0 %358
    %360 = vrot.lane.b32.xlu0 %v335, 2
    %v361 = vpop.permute.xlu0 %360
    %362 = vrot.lane.b32.xlu0 %v339, 2
    %v363 = vpop.permute.xlu0 %362
    %vm372 = vcmask 140304
    %373 = vst.msk [vmem:[%s1 + $0x11] sm:$0x3] %vm372, %v349
    %374 = vst.msk [vmem:[%s1 + $0x29] sm:$0x3] %vm372, %v351
    %375 = vst.msk [vmem:[%s1 + $0x41] sm:$0x3] %vm372, %v353
    %376 = vst.msk [vmem:[%s1 + $0x59] sm:$0x3] %vm372, %v355
    %377 = vst.msk [vmem:[%s1 + $0x71] sm:$0x3] %vm372, %v357
    %378 = vst.msk [vmem:[%s1 + $0x89] sm:$0x3] %vm372, %v359
    %379 = vst.msk [vmem:[%s1 + $0xa1] sm:$0x3] %vm372, %v361
    %380 = vst.msk [vmem:[%s1 + $0xb9] sm:$0x3] %vm372, %v363
    %v381 = vrot.slane %v23, 7
    %v382 = vrot.slane %v25, 7
    %v383 = vrot.slane %v27, 7
    %v384 = vrot.slane %v29, 7
    %v385 = vrot.slane %v31, 7
    %v386 = vrot.slane %v33, 7
    %v387 = vrot.slane %v35, 7
    %v388 = vrot.slane %v37, 7
    %s389 = vtos %v381
    %v390 = vstv %s389
    %s392 = vtos %v382
    %v393 = vstv %s392
    %s395 = vtos %v383
    %v396 = vstv %s395
    %s398 = vtos %v384
    %v399 = vstv %s398
    %s401 = vtos %v385
    %v402 = vstv %s401
    %s404 = vtos %v386
    %v405 = vstv %s404
    %s407 = vtos %v387
    %v408 = vstv %s407
    %s410 = vtos %v388
    %v411 = vstv %s410
    %vm413 = vcmask 9216
    %414 = vst.msk [vmem:[%s1 + $0x11] sm:$0x3] %vm413, %v390
    %415 = vst.msk [vmem:[%s1 + $0x29] sm:$0x3] %vm413, %v393
    %416 = vst.msk [vmem:[%s1 + $0x41] sm:$0x3] %vm413, %v396
    %417 = vst.msk [vmem:[%s1 + $0x59] sm:$0x3] %vm413, %v399
    %418 = vst.msk [vmem:[%s1 + $0x71] sm:$0x3] %vm413, %v402
    %419 = vst.msk [vmem:[%s1 + $0x89] sm:$0x3] %vm413, %v405
    %420 = vst.msk [vmem:[%s1 + $0xa1] sm:$0x3] %vm413, %v408
    %421 = vst.msk [vmem:[%s1 + $0xb9] sm:$0x3] %vm413, %v411
    %422 = vrot.lane.b32.xlu0 %v381, 113
    %v423 = vpop.permute.xlu0 %422
    %424 = vrot.lane.b32.xlu0 %v382, 113
    %v425 = vpop.permute.xlu0 %424
    %426 = vrot.lane.b32.xlu0 %v383, 113
    %v427 = vpop.permute.xlu0 %426
    %428 = vrot.lane.b32.xlu0 %v384, 113
    %v429 = vpop.permute.xlu0 %428
    %430 = vrot.lane.b32.xlu0 %v385, 113
    %v431 = vpop.permute.xlu0 %430
    %432 = vrot.lane.b32.xlu0 %v386, 113
    %v433 = vpop.permute.xlu0 %432
    %434 = vrot.lane.b32.xlu0 %v387, 113
    %v435 = vpop.permute.xlu0 %434
    %436 = vrot.lane.b32.xlu0 %v388, 113
    %v437 = vpop.permute.xlu0 %436
    %s438 = vtos %v423
    %v439 = vstv %s438
    %s441 = vtos %v425
    %v442 = vstv %s441
    %s444 = vtos %v427
    %v445 = vstv %s444
    %s447 = vtos %v429
    %v448 = vstv %s447
    %s450 = vtos %v431
    %v451 = vstv %s450
    %s453 = vtos %v433
    %v454 = vstv %s453
    %s456 = vtos %v435
    %v457 = vstv %s456
    %s459 = vtos %v437
    %v460 = vstv %s459
    %vm462 = vcmask 165008
    %463 = vst.msk [vmem:[%s1 + $0x11] sm:$0x3] %vm462, %v439
    %464 = vst.msk [vmem:[%s1 + $0x29] sm:$0x3] %vm462, %v442
    %465 = vst.msk [vmem:[%s1 + $0x41] sm:$0x3] %vm462, %v445
    %466 = vst.msk [vmem:[%s1 + $0x59] sm:$0x3] %vm462, %v448
    %467 = vst.msk [vmem:[%s1 + $0x71] sm:$0x3] %vm462, %v451
    %468 = vst.msk [vmem:[%s1 + $0x89] sm:$0x3] %vm462, %v454
    %469 = vst.msk [vmem:[%s1 + $0xa1] sm:$0x3] %vm462, %v457
    %470 = vst.msk [vmem:[%s1 + $0xb9] sm:$0x3] %vm462, %v460
    // Predicated region
    $region10: #{replication_pad2d.1} parent=1 // pred_check
      _
    $region11: #{replication_pad2d.1} parent=1 // pred_check_branch
      %472 = sbr.rel (0) target = $region13
    $region12: #{replication_pad2d.1} parent=1 // pred_region
      _
    $region13: #{replication_pad2d.1} parent=1 // pred_fallthru
      _
    // Predicated region
    $region14: #{replication_pad2d.1} parent=1 // pred_check
      _
    $region15: #{replication_pad2d.1} parent=1 // pred_check_branch
      %474 = sbr.rel (0) target = $region17
    $region16: #{replication_pad2d.1} parent=1 // pred_region
      _
    $region17: #{replication_pad2d.1} parent=1 // pred_fallthru
      _
    %475 = vsyncpa [#allocation3], 1

</llo_original>
